<compile_context>
chip_gen: v5e
topology: v5e:2x2
jax: 0.10.0
libtpu: 0.0.40
codegen_flags: <defaults>
</compile_context>

<pallas_src>
import functools

import jax
import jax.numpy as jnp
import numpy as np
from jax.experimental import pallas as pl
from jax.experimental.pallas import tpu as pltpu

_LANE = 128
_MAX_LANE_MULT = 16                       # widest slab considered: 2048 lanes
_TILE_BYTES_BUDGET = 4 * 1024 * 1024      # per-array, per-tile (x2 arrays x2 buffers <= 16 MiB)
_SMALL_BYTES = 2 * 1024 * 1024            # whole-array single-block threshold
_VMEM_LIMIT_BYTES = 32 * 1024 * 1024      # fits v5e/v6e (128 MiB phys) and v7x (64 MiB phys)


def _identity_kernel(x_ref, o_ref):
    # Pure pass-through over the current VMEM tile.
    o_ref[...] = x_ref[...]


def _sublane_pack(dtype) -> int:
    """Sublane packing multiple: 8 (f32), 16 (bf16/f16), 32 (int8/fp8)."""
    itemsize = jnp.dtype(dtype).itemsize
    return max(8, 32 // max(1, itemsize))


def _pick_lane_width(n: int, pack: int):
    """Widest k*128 (k <= 16) lane width; prefer one that divides n exactly."""
    for k in range(_MAX_LANE_MULT, 0, -1):
        if n % (k * _LANE) == 0:
            return k * _LANE, False        # exact divisor -> no padding needed
    k = max(1, min(_MAX_LANE_MULT, n // (pack * _LANE)))
    return k * _LANE, True


@functools.partial(jax.jit, static_argnames=("concept_type",))
def human_concepts_forward(x, concept_type: int = 0):
    """Pallas equivalent of HumanConcepts(concept_type).forward(x)."""
    if concept_type != 0:
        # TODO(synk): concept_type 1..3 reference generate_concept2..4 which are
        # commented out / undefined in the source module; only type 0 exists.
        raise NotImplementedError("only concept_type == 0 is defined in the source module")

    orig_shape = x.shape
    dtype = x.dtype
    n = x.size
    if n == 0:
        return x

    itemsize = jnp.dtype(dtype).itemsize
    pack = _sublane_pack(dtype)
    lane_width, needs_pad = _pick_lane_width(n, pack)

    flat = x.reshape(-1)
    n_pad = n

    if needs_pad and n * itemsize <= _SMALL_BYTES:
        # Tiny odd-sized input: one full-array block (full-dim blocks bypass the
        # (8,128) divisibility rule) -> no pad, no slice.
        rows, lane_width = 1, n
        x2d = flat.reshape(rows, lane_width)
        block = (rows, lane_width)
        grid = (1,)
    else:
        if needs_pad:
            # Rare: large input whose element count has no k*128 divisor.
            # Pad to one lane-width multiple (<= 2047 extra elements).
            n_pad = ((n + lane_width - 1) // lane_width) * lane_width
            flat = jnp.pad(flat, (0, n_pad - n))
        rows = n_pad // lane_width
        x2d = flat.reshape(rows, lane_width)

        if rows <= pack or rows * lane_width * itemsize <= _SMALL_BYTES:
            block = (rows, lane_width)                  # single full-array block
            grid = (1,)
        else:
            max_tile_rows = max(
                pack, (_TILE_BYTES_BUDGET // (lane_width * itemsize)) // pack * pack)
            tile_rows = min((rows // pack) * pack, max_tile_rows)
            block = (tile_rows, lane_width)
            grid = (pl.cdiv(rows, tile_rows),)          # ragged last tile is masked

    out2d = pl.pallas_call(
        _identity_kernel,
        out_shape=jax.ShapeDtypeStruct((rows, lane_width), dtype),
        grid_spec=pltpu.PrefetchScalarGridSpec(
            num_scalar_prefetch=0,
            grid=grid,
            in_specs=[pl.BlockSpec(block, lambda i: (i, 0))],
            out_specs=pl.BlockSpec(block, lambda i: (i, 0)),
        ),
        compiler_params=pltpu.CompilerParams(
            dimension_semantics=("parallel",),          # shards grid across TCs on v7x
            vmem_limit_bytes=_VMEM_LIMIT_BYTES,
        ),
        cost_estimate=pl.CostEstimate(
            flops=0, transcendentals=0,
            bytes_accessed=2 * rows * lane_width * itemsize),
    )(x2d)

    out_flat = out2d.reshape(-1)
    if n_pad != n:
        out_flat = out_flat[:n]
    return out_flat.reshape(orig_shape)


if __name__ == "__main__":
    key = jax.random.PRNGKey(0)
    # Small NCHW input consistent with the module's usage: batch=2, C=4, 16x16.
    x = jax.random.normal(key, (2, 4, 16, 16), dtype=jnp.float32)
    x_ref = np.asarray(x)

    y = jax.block_until_ready(human_concepts_forward(x, concept_type=0))
    assert y.shape == x_ref.shape and y.dtype == x_ref.dtype
    assert np.array_equal(np.asarray(y), x_ref)

    # Odd element count (not a multiple of 128) with bf16 packing: exercises the
    # single full-array-block path (no padding, no slicing).
    x2 = jax.random.normal(jax.random.PRNGKey(0), (3, 5, 7), dtype=jnp.bfloat16)
    x2_ref = np.asarray(x2)
    y2 = jax.block_until_ready(human_concepts_forward(x2))
    assert y2.shape == x2_ref.shape and y2.dtype == x2_ref.dtype
    assert np.array_equal(np.asarray(y2), x2_ref)

    # Lane-divisible small slab with rows > 1 (exercises the 2D reshape path).
    x3 = jax.random.normal(jax.random.PRNGKey(0), (8, 1024), dtype=jnp.float32)
    x3_ref = np.asarray(x3)
    y3 = jax.block_until_ready(human_concepts_forward(x3))
    assert y3.shape == x3_ref.shape and y3.dtype == x3_ref.dtype
    assert np.array_equal(np.asarray(y3), x3_ref)

    print("KERNEL_OK")
</pallas_src>

<mosaic_0001>
module attributes {stable_mosaic.version = 11 : i64} {
  func.func @_identity_kernel(%arg0: i32, %arg1: memref<1x2048xf32, #tpu.memory_space<vmem>>, %arg2: memref<1x2048xf32, #tpu.memory_space<vmem>>) attributes {dimension_semantics = [#tpu.dimension_semantics<parallel>], iteration_bounds = array<i64: 1>, scalar_prefetch = 0 : i64, scratch_operands = 0 : i64, tpu.core_type = #tpu.core_type<tc>, window_params = [{transform_indices = @transform_0, window_bounds = array<i64: 1, 2048>}, {transform_indices = @transform_1, window_bounds = array<i64: 1, 2048>}]} {
    %c0 = arith.constant 0 : index
    %c0_0 = arith.constant 0 : index
    %0 = vector.load %arg1[%c0, %c0_0] : memref<1x2048xf32, #tpu.memory_space<vmem>>, vector<1x2048xf32>
    %c0_1 = arith.constant 0 : index
    %c0_2 = arith.constant 0 : index
    %1 = vector.load %arg2[%c0_1, %c0_2] : memref<1x2048xf32, #tpu.memory_space<vmem>>, vector<1x2048xf32>
    tpu.vector_store %arg2[%c0_1, %c0_2], %0 {strides = array<i32>} : memref<1x2048xf32, #tpu.memory_space<vmem>>, vector<1x2048xf32>,
    return
  }
  func.func @transform_0(%arg0: i32) -> (i32, i32) {
    %c0_i32 = arith.constant 0 : i32
    %c0_i32_0 = arith.constant 0 : i32
    return %arg0, %c0_i32 : i32, i32
  }
  func.func @transform_1(%arg0: i32) -> (i32, i32) {
    %c0_i32 = arith.constant 0 : i32
    %c0_i32_0 = arith.constant 0 : i32
    return %arg0, %c0_i32 : i32, i32
  }
}

</mosaic_0001>

<llo_original>
// kernel: human_concepts_forward.1
$region0: #{human_concepts_forward.1}
  #allocation0 [shape = 'u32[]', space=smem, size = 0x4, offset = 0x4, fixed_abs, tag = 'smem constant byte address 0x4 - core index']
  #allocation1 [shape = 'u32[72,128]{1,0:T(1,128)}', space=vmem, size = 0x9000, scoped, tag = 'internal scratch']
  %s0 = inlined_call_operand.vmem [shape: f32[1,2048], index: 0, kind: input, shape index: {}]
  %s1 = inlined_call_operand.vmem [shape: f32[1,2048], index: 1, kind: output, shape index: {}]
  %s2 = sld [smem:[#allocation0]]
  $region14: #{human_concepts_forward.1} parent=0
    _
  %s4 = ssub.s32 1, %s2
  %s5 = scalar_select 0, %s4, %s2
  // Predicated region
  $region2: #{human_concepts_forward.1} parent=0 // pred_check
    _
  $region3: #{human_concepts_forward.1} parent=0 // pred_check_branch
    %7 = sbr.rel (0) target = $region5
  $region4: #{human_concepts_forward.1} parent=0 // pred_region
    _
  $region5: #{human_concepts_forward.1} parent=0 // pred_fallthru
    _
  %v8 = vld [vmem:[%s0] sm:$0xff]
  %v9 = vld [vmem:[%s0 + $0x8] sm:$0xff]
  %10 = vst [vmem:[%s1] sm:$0xff] %v8
  %11 = vst [vmem:[%s1 + $0x8] sm:$0xff] %v9
  // Predicated region
  $region6: #{human_concepts_forward.1} parent=0 // pred_check
    _
  $region7: #{human_concepts_forward.1} parent=0 // pred_check_branch
    %13 = sbr.rel (0) target = $region9
  $region8: #{human_concepts_forward.1} parent=0 // pred_region
    _
  $region9: #{human_concepts_forward.1} parent=0 // pred_fallthru
    _
  // Predicated region
  $region10: #{human_concepts_forward.1} parent=0 // pred_check
    _
  $region11: #{human_concepts_forward.1} parent=0 // pred_check_branch
    %15 = sbr.rel (0) target = $region13
  $region12: #{human_concepts_forward.1} parent=0 // pred_region
    _
  $region13: #{human_concepts_forward.1} parent=0 // pred_fallthru
    _

</llo_original>
